<compile_context>
chip_gen: v7x
topology: tpu7x:2x2x1
jax: 0.10.0
libtpu: 0.0.40
codegen_flags: <defaults>
</compile_context>

<pallas_src>
import jax
import jax.numpy as jnp
from jax.experimental import pallas as pl
from jax.experimental.pallas import tpu as pltpu

LANES = 128     # lane width
TR_MAX = 2048   # max sublane-rows per grid step (tile = TR x 128 anchors)
TR_MIN = 32     # row granularity: covers f32 (8) / bf16 (16) / int8 (32) tiling


def _cdiv(a, b):
    return -(-a // b)


def _round_up(x, m):
    return _cdiv(x, m) * m


def _num_megacore_splits():
    """2 on megacore parts (2 TensorCores/chip: v4/v5p/v7x), 1 on v5e/v6e."""
    try:
        kind = jax.devices()[0].device_kind.lower()
    except Exception:
        return 2  # correct everywhere; merely a serial outer loop on 1-TC parts
    if "lite" in kind or "v5e" in kind or "v6e" in kind:
        return 1
    return 2


def _iou_loss_kernel(pred_ref, tgt_ref, mask_ref, acc_ref):
    """One (TR, 128)-anchor tile of IoU loss (loss_type='iou') + masked sums.

    pred_ref, tgt_ref : (4, TR, 128) component-major boxes (cx, cy, w, h),
                        native dtype (f32 / bf16), upcast to f32 in VMEM.
    mask_ref          : (TR, 128)    foreground mask (int8 / float), 0 = bg.
    acc_ref           : (1, 2, 8, 128) per-core resident accumulator:
                        [0, 0] = loss partial sums, [0, 1] = fg count.
    """
    step = pl.program_id(1)

    @pl.when(step == 0)
    def _init():
        acc_ref[...] = jnp.zeros_like(acc_ref)

    f32 = jnp.float32
    px = pred_ref[0].astype(f32)
    py = pred_ref[1].astype(f32)
    pw = pred_ref[2].astype(f32)
    ph = pred_ref[3].astype(f32)
    tx = tgt_ref[0].astype(f32)
    ty = tgt_ref[1].astype(f32)
    tw = tgt_ref[2].astype(f32)
    th = tgt_ref[3].astype(f32)
    mask = mask_ref[...].astype(f32)

    # Hoisted half-extents (computed once, reused for tl and br).
    phw = pw * 0.5
    phh = ph * 0.5
    thw = tw * 0.5
    thh = th * 0.5

    # Intersection box (top-left / bottom-right).
    tl_x = jnp.maximum(px - phw, tx - thw)
    tl_y = jnp.maximum(py - phh, ty - thh)
    br_x = jnp.minimum(px + phw, tx + thw)
    br_y = jnp.minimum(py + phh, ty + thh)

    area_p = pw * ph
    area_g = tw * th
    overlap = (tl_x < br_x) & (tl_y < br_y)
    area_i = jnp.where(overlap, (br_x - tl_x) * (br_y - tl_y), 0.0)

    denom = area_p + area_g - area_i + 1e-16
    r = pl.reciprocal(denom, approx=True)   # EUP slot (free under the DMA)
    r = r * (2.0 - denom * r)               # one Newton step -> ~f32 accuracy
    iou = area_i * r
    loss = (1.0 - iou * iou) * mask         # loss_type == 'iou', masked

    # Fold (TR, 128) -> (8, 128): sublane-aligned vreg-group sums (pure VPU),
    # accumulated into the resident output block.
    tr = loss.shape[0]
    acc_ref[0, 0] += loss.reshape(tr // 8, 8, LANES).sum(axis=0)
    acc_ref[0, 1] += mask.reshape(tr // 8, 8, LANES).sum(axis=0)


def _masked_iou_loss_sums(pred_c, tgt_c, mask_c, splits, tr, steps):
    """pred_c, tgt_c: (4, R, 128); mask_c: (R, 128); R == splits*steps*tr.

    Returns (splits, 2, 8, 128) f32 partials: [:, 0] loss sums, [:, 1] fg count.
    """
    return pl.pallas_call(
        _iou_loss_kernel,
        out_shape=jax.ShapeDtypeStruct((splits, 2, 8, LANES), jnp.float32),
        grid_spec=pltpu.PrefetchScalarGridSpec(
            num_scalar_prefetch=0,
            grid=(splits, steps),
            in_specs=[
                pl.BlockSpec((4, tr, LANES), lambda c, i: (0, c * steps + i, 0)),
                pl.BlockSpec((4, tr, LANES), lambda c, i: (0, c * steps + i, 0)),
                pl.BlockSpec((tr, LANES), lambda c, i: (c * steps + i, 0)),
            ],
            out_specs=pl.BlockSpec((1, 2, 8, LANES), lambda c, i: (c, 0, 0, 0)),
        ),
        compiler_params=pltpu.CompilerParams(
            dimension_semantics=("parallel", "arbitrary"),
            vmem_limit_bytes=32 * 1024 * 1024,
        ),
    )(pred_c, tgt_c, mask_c)


def yolox_iou_loss(pred_c, tgt_c, fg_mask, reg_weight=5.0):
    """Equivalent of Loss.get_losses' final reduction:

        loss = reg_weight * sum(IOUloss(bbox_preds[fg], reg_targets[fg])) / max(num_fg, 1)

    pred_c  : (4, ...) component-major predicted boxes (cx, cy, w, h), native dtype.
    tgt_c   : (4, ...) component-major matched-gt boxes (only fg rows matter);
              kept at its own (f32) precision -- never downcast to the pred dtype.
    fg_mask : (...)    foreground mask (bool / int / float); any caller-side
              padding must carry fg_mask == 0.
    """
    # TODO(synk): yolox_utils.get_assignments (SimOTA dynamic label assignment)
    # has data-dependent output shapes; reg_targets / fg_mask are produced
    # outside the kernel and consumed here as dense per-anchor tensors.
    n = int(fg_mask.size)
    pred = pred_c.reshape(4, n)
    tgt = tgt_c.reshape(4, n)
    mask = fg_mask.reshape(n)
    if mask.dtype == jnp.bool_:
        mask = mask.astype(jnp.int8)   # tiny copy; keeps the mask stream 1 B/anchor

    splits = _num_megacore_splits()
    rows = _cdiv(n, LANES)
    if rows < splits * TR_MIN:
        splits = 1                     # too few rows to split across cores
    tr = min(TR_MAX, _round_up(_cdiv(rows, splits), TR_MIN))
    steps = _cdiv(rows, splits * tr)
    r_pad = splits * steps * tr
    n_pad = r_pad * LANES

    if n_pad != n:
        # TODO(synk): have the detection head emit tile-aligned component-major
        # (4, r_pad, 128) slabs (fg_mask == 0 on padding) so this single pad
        # copy disappears entirely; when n is already aligned this branch is
        # skipped and the reshapes below are free.  (An allow_input_fusion A/B
        # is a possible partial mitigation if upstream cannot change.)
        pad = n_pad - n
        pred = jnp.pad(pred, ((0, 0), (0, pad)))
        tgt = jnp.pad(tgt, ((0, 0), (0, pad)))
        mask = jnp.pad(mask, (0, pad))

    pred = pred.reshape(4, r_pad, LANES)
    tgt = tgt.reshape(4, r_pad, LANES)
    mask = mask.reshape(r_pad, LANES)

    acc = _masked_iou_loss_sums(pred, tgt, mask, splits, tr, steps)
    loss_sum = jnp.sum(acc[:, 0])                       # (splits,8,128) -> scalar
    num_fg = jnp.maximum(jnp.sum(acc[:, 1]), 1.0)
    return reg_weight * loss_sum / num_fg


def yolox_iou_loss_from_anchor_major(bbox_preds, reg_targets, fg_mask, reg_weight=5.0):
    """Compatibility path for the original (B, A, 4) anchor-major layout.

    NOTE: the moveaxis below re-introduces the minor-dim transpose copy that the
    component-major entry point avoids; prefer emitting (4, ...) upstream.
    """
    return yolox_iou_loss(jnp.moveaxis(bbox_preds, -1, 0),
                          jnp.moveaxis(reg_targets, -1, 0),
                          fg_mask, reg_weight)


def _reference_loss(pred_c, tgt_c, fg_mask, reg_weight=5.0):
    """Pure-JAX reference mirroring the PyTorch IOUloss / Loss math."""
    p = pred_c.reshape(4, -1).astype(jnp.float32).T      # (N, 4)
    t = tgt_c.reshape(4, -1).astype(jnp.float32).T
    m = fg_mask.reshape(-1).astype(jnp.float32)
    tl = jnp.maximum(p[:, :2] - p[:, 2:] / 2, t[:, :2] - t[:, 2:] / 2)
    br = jnp.minimum(p[:, :2] + p[:, 2:] / 2, t[:, :2] + t[:, 2:] / 2)
    area_p = jnp.prod(p[:, 2:], axis=1)
    area_g = jnp.prod(t[:, 2:], axis=1)
    en = jnp.prod((tl < br).astype(p.dtype), axis=1)
    area_i = jnp.prod(br - tl, axis=1) * en
    iou = area_i / (area_p + area_g - area_i + 1e-16)
    loss = 1.0 - iou ** 2
    num_fg = jnp.maximum(jnp.sum(m), 1.0)
    return reg_weight * jnp.sum(loss * m) / num_fg


if __name__ == "__main__":
    key = jax.random.PRNGKey(0)

    def make_case(k, B, A, pred_dtype=jnp.float32):
        k1, k2, k3, k4, k5 = jax.random.split(k, 5)
        pred_c = jnp.stack([
            jax.random.uniform(k1, (B, A), jnp.float32, 0.0, 16.0),   # cx
            jax.random.uniform(k2, (B, A), jnp.float32, 0.0, 16.0),   # cy
            jax.random.uniform(k3, (B, A), jnp.float32, 1.0, 5.0),    # w
            jax.random.uniform(k4, (B, A), jnp.float32, 1.0, 5.0),    # h
        ]).astype(pred_dtype)
        kt1, kt2, kt3, kt4, km = jax.random.split(k5, 5)
        tgt_c = jnp.stack([
            jax.random.uniform(kt1, (B, A), jnp.float32, 0.0, 16.0),
            jax.random.uniform(kt2, (B, A), jnp.float32, 0.0, 16.0),
            jax.random.uniform(kt3, (B, A), jnp.float32, 1.0, 5.0),
            jax.random.uniform(kt4, (B, A), jnp.float32, 1.0, 5.0),
        ])
        fg = jax.random.uniform(km, (B, A)) < 0.2        # ~20% foreground, bool
        return pred_c, tgt_c, fg

    k1, k2, k3 = jax.random.split(key, 3)

    # 1) f32 boxes, anchor count not a multiple of 128 (exercises the pad path).
    pred_c, tgt_c, fg = make_case(k1, 2, 200)
    out = jax.block_until_ready(yolox_iou_loss(pred_c, tgt_c, fg))
    ref = _reference_loss(pred_c, tgt_c, fg)
    assert jnp.allclose(out, ref, rtol=1e-4, atol=1e-4), (out, ref)

    # Anchor-major compatibility wrapper matches the component-major path.
    out_am = jax.block_until_ready(yolox_iou_loss_from_anchor_major(
        jnp.moveaxis(pred_c, 0, -1), jnp.moveaxis(tgt_c, 0, -1), fg))
    assert jnp.allclose(out_am, ref, rtol=1e-4, atol=1e-4), (out_am, ref)

    # 2) tile-aligned anchor count (zero-copy path: pure reshape, no pad).
    pred_c2, tgt_c2, fg2 = make_case(k2, 1, 4096)
    out2 = jax.block_until_ready(yolox_iou_loss(pred_c2, tgt_c2, fg2))
    ref2 = _reference_loss(pred_c2, tgt_c2, fg2)
    assert jnp.allclose(out2, ref2, rtol=1e-4, atol=1e-4), (out2, ref2)

    # 3) bf16 predictions with f32 targets (no widening at the call boundary).
    pred_c3, tgt_c3, fg3 = make_case(k3, 2, 200, pred_dtype=jnp.bfloat16)
    out3 = jax.block_until_ready(yolox_iou_loss(pred_c3, tgt_c3, fg3))
    ref3 = _reference_loss(pred_c3, tgt_c3, fg3)   # reference sees the same bf16 values
    assert jnp.allclose(out3, ref3, rtol=1e-4, atol=1e-4), (out3, ref3)

    print("KERNEL_OK")
</pallas_src>

<mosaic_0001>
module attributes {stable_mosaic.version = 11 : i64} {
  func.func @_iou_loss_kernel(%arg0: i32, %arg1: i32, %arg2: memref<4x32x128xf32, #tpu.memory_space<vmem>>, %arg3: memref<4x32x128xf32, #tpu.memory_space<vmem>>, %arg4: memref<32x128xi8, #tpu.memory_space<vmem>>, %arg5: memref<1x2x8x128xf32, #tpu.memory_space<vmem>>) attributes {dimension_semantics = [#tpu.dimension_semantics<parallel>, #tpu.dimension_semantics<arbitrary>], iteration_bounds = array<i64: 1, 1>, scalar_prefetch = 0 : i64, scratch_operands = 0 : i64, tpu.core_type = #tpu.core_type<tc>, window_params = [{transform_indices = @transform_0, window_bounds = array<i64: 4, 32, 128>}, {transform_indices = @transform_1, window_bounds = array<i64: 4, 32, 128>}, {transform_indices = @transform_2, window_bounds = array<i64: 32, 128>}, {transform_indices = @transform_3, window_bounds = array<i64: 1, 2, 8, 128>}]} {
    %c0_i32 = arith.constant 0 : i32
    %0 = arith.cmpi eq, %arg1, %c0_i32 : i32
    %1 = arith.extui %0 : i1 to i32
    %c0_i32_0 = arith.constant 0 : i32
    %2 = arith.cmpi ne, %1, %c0_i32_0 : i32
    scf.if %2 {
      %cst_48 = arith.constant 0.000000e+00 : f32
      %81 = vector.broadcast %cst_48 : f32 to vector<1x2x8x128xf32>
      %c0_49 = arith.constant 0 : index
      %c0_50 = arith.constant 0 : index
      %c0_51 = arith.constant 0 : index
      %c0_52 = arith.constant 0 : index
      %82 = vector.load %arg5[%c0_49, %c0_50, %c0_51, %c0_52] : memref<1x2x8x128xf32, #tpu.memory_space<vmem>>, vector<1x2x8x128xf32>
      tpu.vector_store %arg5[%c0_49, %c0_50, %c0_51, %c0_52], %81 {strides = array<i32>} : memref<1x2x8x128xf32, #tpu.memory_space<vmem>>, vector<1x2x8x128xf32>,
    } else {
    }
    %c0 = arith.constant 0 : index
    %c0_1 = arith.constant 0 : index
    %c0_2 = arith.constant 0 : index
    %3 = vector.load %arg2[%c0, %c0_1, %c0_2] : memref<4x32x128xf32, #tpu.memory_space<vmem>>, vector<1x32x128xf32>
    %4 = vector.shape_cast %3 : vector<1x32x128xf32> to vector<32x128xf32>
    %c1 = arith.constant 1 : index
    %c0_3 = arith.constant 0 : index
    %c0_4 = arith.constant 0 : index
    %5 = vector.load %arg2[%c1, %c0_3, %c0_4] : memref<4x32x128xf32, #tpu.memory_space<vmem>>, vector<1x32x128xf32>
    %6 = vector.shape_cast %5 : vector<1x32x128xf32> to vector<32x128xf32>
    %c2 = arith.constant 2 : index
    %c0_5 = arith.constant 0 : index
    %c0_6 = arith.constant 0 : index
    %7 = vector.load %arg2[%c2, %c0_5, %c0_6] : memref<4x32x128xf32, #tpu.memory_space<vmem>>, vector<1x32x128xf32>
    %8 = vector.shape_cast %7 : vector<1x32x128xf32> to vector<32x128xf32>
    %c3 = arith.constant 3 : index
    %c0_7 = arith.constant 0 : index
    %c0_8 = arith.constant 0 : index
    %9 = vector.load %arg2[%c3, %c0_7, %c0_8] : memref<4x32x128xf32, #tpu.memory_space<vmem>>, vector<1x32x128xf32>
    %10 = vector.shape_cast %9 : vector<1x32x128xf32> to vector<32x128xf32>
    %c0_9 = arith.constant 0 : index
    %c0_10 = arith.constant 0 : index
    %c0_11 = arith.constant 0 : index
    %11 = vector.load %arg3[%c0_9, %c0_10, %c0_11] : memref<4x32x128xf32, #tpu.memory_space<vmem>>, vector<1x32x128xf32>
    %12 = vector.shape_cast %11 : vector<1x32x128xf32> to vector<32x128xf32>
    %c1_12 = arith.constant 1 : index
    %c0_13 = arith.constant 0 : index
    %c0_14 = arith.constant 0 : index
    %13 = vector.load %arg3[%c1_12, %c0_13, %c0_14] : memref<4x32x128xf32, #tpu.memory_space<vmem>>, vector<1x32x128xf32>
    %14 = vector.shape_cast %13 : vector<1x32x128xf32> to vector<32x128xf32>
    %c2_15 = arith.constant 2 : index
    %c0_16 = arith.constant 0 : index
    %c0_17 = arith.constant 0 : index
    %15 = vector.load %arg3[%c2_15, %c0_16, %c0_17] : memref<4x32x128xf32, #tpu.memory_space<vmem>>, vector<1x32x128xf32>
    %16 = vector.shape_cast %15 : vector<1x32x128xf32> to vector<32x128xf32>
    %c3_18 = arith.constant 3 : index
    %c0_19 = arith.constant 0 : index
    %c0_20 = arith.constant 0 : index
    %17 = vector.load %arg3[%c3_18, %c0_19, %c0_20] : memref<4x32x128xf32, #tpu.memory_space<vmem>>, vector<1x32x128xf32>
    %18 = vector.shape_cast %17 : vector<1x32x128xf32> to vector<32x128xf32>
    %c0_21 = arith.constant 0 : index
    %c0_22 = arith.constant 0 : index
    %19 = vector.load %arg4[%c0_21, %c0_22] : memref<32x128xi8, #tpu.memory_space<vmem>>, vector<32x128xi8>
    %20 = arith.sitofp %19 : vector<32x128xi8> to vector<32x128xf32>
    %cst = arith.constant 5.000000e-01 : f32
    %21 = vector.broadcast %cst : f32 to vector<32x128xf32>
    %22 = arith.mulf %8, %21 : vector<32x128xf32>
    %cst_23 = arith.constant 5.000000e-01 : f32
    %23 = vector.broadcast %cst_23 : f32 to vector<32x128xf32>
    %24 = arith.mulf %10, %23 : vector<32x128xf32>
    %cst_24 = arith.constant 5.000000e-01 : f32
    %25 = vector.broadcast %cst_24 : f32 to vector<32x128xf32>
    %26 = arith.mulf %16, %25 : vector<32x128xf32>
    %cst_25 = arith.constant 5.000000e-01 : f32
    %27 = vector.broadcast %cst_25 : f32 to vector<32x128xf32>
    %28 = arith.mulf %18, %27 : vector<32x128xf32>
    %29 = arith.subf %4, %22 : vector<32x128xf32>
    %30 = arith.subf %12, %26 : vector<32x128xf32>
    %31 = arith.maximumf %29, %30 : vector<32x128xf32>
    %32 = arith.subf %6, %24 : vector<32x128xf32>
    %33 = arith.subf %14, %28 : vector<32x128xf32>
    %34 = arith.maximumf %32, %33 : vector<32x128xf32>
    %35 = arith.addf %4, %22 : vector<32x128xf32>
    %36 = arith.addf %12, %26 : vector<32x128xf32>
    %37 = arith.minimumf %35, %36 : vector<32x128xf32>
    %38 = arith.addf %6, %24 : vector<32x128xf32>
    %39 = arith.addf %14, %28 : vector<32x128xf32>
    %40 = arith.minimumf %38, %39 : vector<32x128xf32>
    %41 = arith.mulf %8, %10 : vector<32x128xf32>
    %42 = arith.mulf %16, %18 : vector<32x128xf32>
    %43 = arith.cmpf olt, %31, %37 : vector<32x128xf32>
    %44 = arith.cmpf olt, %34, %40 : vector<32x128xf32>
    %45 = arith.andi %43, %44 : vector<32x128xi1>
    %46 = arith.subf %37, %31 : vector<32x128xf32>
    %47 = arith.subf %40, %34 : vector<32x128xf32>
    %48 = arith.mulf %46, %47 : vector<32x128xf32>
    %cst_26 = arith.constant 0.000000e+00 : f32
    %49 = vector.broadcast %cst_26 : f32 to vector<32x128xf32>
    %50 = arith.select %45, %48, %49 : vector<32x128xi1>, vector<32x128xf32>
    %51 = arith.addf %41, %42 : vector<32x128xf32>
    %52 = arith.subf %51, %50 : vector<32x128xf32>
    %cst_27 = arith.constant 1.000000e-16 : f32
    %53 = vector.broadcast %cst_27 : f32 to vector<32x128xf32>
    %54 = arith.addf %52, %53 : vector<32x128xf32>
    %55 = tpu.reciprocal %54 {approx = true} : vector<32x128xf32> -> vector<32x128xf32>
    %56 = arith.mulf %54, %55 : vector<32x128xf32>
    %cst_28 = arith.constant 2.000000e+00 : f32
    %57 = vector.broadcast %cst_28 : f32 to vector<32x128xf32>
    %58 = arith.subf %57, %56 : vector<32x128xf32>
    %59 = arith.mulf %55, %58 : vector<32x128xf32>
    %60 = arith.mulf %50, %59 : vector<32x128xf32>
    %61 = arith.mulf %60, %60 : vector<32x128xf32>
    %cst_29 = arith.constant 1.000000e+00 : f32
    %62 = vector.broadcast %cst_29 : f32 to vector<32x128xf32>
    %63 = arith.subf %62, %61 : vector<32x128xf32>
    %64 = arith.mulf %63, %20 : vector<32x128xf32>
    %c0_30 = arith.constant 0 : index
    %c0_31 = arith.constant 0 : index
    %c0_32 = arith.constant 0 : index
    %c0_33 = arith.constant 0 : index
    %65 = vector.load %arg5[%c0_30, %c0_31, %c0_32, %c0_33] : memref<1x2x8x128xf32, #tpu.memory_space<vmem>>, vector<1x1x8x128xf32>
    %66 = vector.shape_cast %65 : vector<1x1x8x128xf32> to vector<8x128xf32>
    %67 = vector.shape_cast %64 : vector<32x128xf32> to vector<4x8x128xf32>
    %cst_34 = arith.constant dense<0.000000e+00> : vector<8x128xf32>
    %68 = vector.multi_reduction <add>, %67, %cst_34 [0] : vector<4x8x128xf32> to vector<8x128xf32>
    %69 = arith.addf %66, %68 : vector<8x128xf32>
    %c0_35 = arith.constant 0 : index
    %c0_36 = arith.constant 0 : index
    %c0_37 = arith.constant 0 : index
    %c0_38 = arith.constant 0 : index
    %70 = vector.load %arg5[%c0_35, %c0_36, %c0_37, %c0_38] : memref<1x2x8x128xf32, #tpu.memory_space<vmem>>, vector<1x1x8x128xf32>
    %71 = vector.shape_cast %70 : vector<1x1x8x128xf32> to vector<8x128xf32>
    %72 = vector.shape_cast %69 : vector<8x128xf32> to vector<1x1x8x128xf32>
    tpu.vector_store %arg5[%c0_35, %c0_36, %c0_37, %c0_38], %72 {strides = array<i32>} : memref<1x2x8x128xf32, #tpu.memory_space<vmem>>, vector<1x1x8x128xf32>,
    %c0_39 = arith.constant 0 : index
    %c1_40 = arith.constant 1 : index
    %c0_41 = arith.constant 0 : index
    %c0_42 = arith.constant 0 : index
    %73 = vector.load %arg5[%c0_39, %c1_40, %c0_41, %c0_42] : memref<1x2x8x128xf32, #tpu.memory_space<vmem>>, vector<1x1x8x128xf32>
    %74 = vector.shape_cast %73 : vector<1x1x8x128xf32> to vector<8x128xf32>
    %75 = vector.shape_cast %20 : vector<32x128xf32> to vector<4x8x128xf32>
    %cst_43 = arith.constant dense<0.000000e+00> : vector<8x128xf32>
    %76 = vector.multi_reduction <add>, %75, %cst_43 [0] : vector<4x8x128xf32> to vector<8x128xf32>
    %77 = arith.addf %74, %76 : vector<8x128xf32>
    %c0_44 = arith.constant 0 : index
    %c1_45 = arith.constant 1 : index
    %c0_46 = arith.constant 0 : index
    %c0_47 = arith.constant 0 : index
    %78 = vector.load %arg5[%c0_44, %c1_45, %c0_46, %c0_47] : memref<1x2x8x128xf32, #tpu.memory_space<vmem>>, vector<1x1x8x128xf32>
    %79 = vector.shape_cast %78 : vector<1x1x8x128xf32> to vector<8x128xf32>
    %80 = vector.shape_cast %77 : vector<8x128xf32> to vector<1x1x8x128xf32>
    tpu.vector_store %arg5[%c0_44, %c1_45, %c0_46, %c0_47], %80 {strides = array<i32>} : memref<1x2x8x128xf32, #tpu.memory_space<vmem>>, vector<1x1x8x128xf32>,
    return
  }
  func.func @transform_0(%arg0: i32, %arg1: i32) -> (i32, i32, i32) {
    %c1_i32 = arith.constant 1 : i32
    %0 = arith.muli %arg0, %c1_i32 : i32
    %1 = arith.addi %0, %arg1 : i32
    %c0_i32 = arith.constant 0 : i32
    %c0_i32_0 = arith.constant 0 : i32
    %c0_i32_1 = arith.constant 0 : i32
    return %c0_i32, %1, %c0_i32_0 : i32, i32, i32
  }
  func.func @transform_1(%arg0: i32, %arg1: i32) -> (i32, i32, i32) {
    %c1_i32 = arith.constant 1 : i32
    %0 = arith.muli %arg0, %c1_i32 : i32
    %1 = arith.addi %0, %arg1 : i32
    %c0_i32 = arith.constant 0 : i32
    %c0_i32_0 = arith.constant 0 : i32
    %c0_i32_1 = arith.constant 0 : i32
    return %c0_i32, %1, %c0_i32_0 : i32, i32, i32
  }
  func.func @transform_2(%arg0: i32, %arg1: i32) -> (i32, i32) {
    %c1_i32 = arith.constant 1 : i32
    %0 = arith.muli %arg0, %c1_i32 : i32
    %1 = arith.addi %0, %arg1 : i32
    %c0_i32 = arith.constant 0 : i32
    %c0_i32_0 = arith.constant 0 : i32
    return %1, %c0_i32 : i32, i32
  }
  func.func @transform_3(%arg0: i32, %arg1: i32) -> (i32, i32, i32, i32) {
    %c0_i32 = arith.constant 0 : i32
    %c0_i32_0 = arith.constant 0 : i32
    %c0_i32_1 = arith.constant 0 : i32
    %c0_i32_2 = arith.constant 0 : i32
    return %arg0, %c0_i32, %c0_i32_0, %c0_i32_1 : i32, i32, i32, i32
  }
}

</mosaic_0001>

<llo_original>
// kernel: tpu_custom_call.1
$region0: #{tpu_custom_call.1}
  #allocation0 [shape = 'u32[]', space=smem, size = 0x4, offset = 0x4, fixed_abs, tag = 'smem constant byte address 0x4 - core index']
  #allocation1 [shape = 'u32[144,128]{1,0:T(1,128)}', space=vmem, size = 0x12000, scoped, tag = 'internal scratch']
  %s0 = inlined_call_operand.hbm [shape: f32[4,32,128], index: 0, kind: input, shape index: {}]
  %s1 = inlined_call_operand.hbm [shape: f32[4,32,128], index: 1, kind: input, shape index: {}]
  %s2 = inlined_call_operand.hbm [shape: s8[32,128], index: 2, kind: input, shape index: {}]
  %s3 = inlined_call_operand.hbm [shape: f32[1,2,8,128], index: 3, kind: output, shape index: {}]
  %s4 = sld [smem:[#allocation0]]
  $region38: #{tpu_custom_call.1} parent=0
    _
  %s6 = ssub.s32 1, %s4
  %s7 = scalar_select 0, %s6, %s4
  $region1: #{tpu_custom_call.1} parent=0
    #allocation2 [shape = 'u8[65536]{0}', space=vmem, size = 0x10000, scoped, tag = 'input window, operand 0, single buffered']
    #allocation3 [shape = 's32[1]{0}', space=sflag, size = 0x4, scoped, tag = 'scoped memory for tpu_custom_call.1']
    #allocation4 [shape = 's32[1]{0}', space=sflag, size = 0x4, scoped, tag = 'scoped memory for tpu_custom_call.1']
    #allocation5 [shape = 'u8[65536]{0}', space=vmem, size = 0x10000, scoped, tag = 'input window, operand 1, single buffered']
    #allocation6 [shape = 's32[1]{0}', space=sflag, size = 0x4, scoped, tag = 'scoped memory for tpu_custom_call.1']
    #allocation7 [shape = 'u8[4096]{0}', space=vmem, size = 0x1000, scoped, tag = 'input window, operand 2, single buffered']
    #allocation8 [shape = 'u8[8192]{0}', space=vmem, size = 0x2000, scoped, tag = 'output window, operand 0, single buffered']
    %8 = vsyncpa [#allocation3], 0
    %9 = vsyncpa [#allocation6], 0
    %10 = vsyncpa [#allocation4], 0
    // Predicated region
    $region2: #{tpu_custom_call.1} parent=1 // pred_check
      _
    $region3: #{tpu_custom_call.1} parent=1 // pred_check_branch
      %12 = sbr.rel (0) target = $region5
    $region4: #{tpu_custom_call.1} parent=1 // pred_region
      %s13 = sadd.s32 0, 0
      %s14 = smul.u32 4, %s13
      %s16 = ssub.s32 2048, 2048
      %17 = vsyncadd [#allocation3], %s16
      %s18 = smul.addr %s14, 128
      %s19 = scalar_lea.hbm %s0, %s18
      %s20 = sshll.u32 [#allocation2], 4
      %s21 = int_to_ptr.vmem [resolvable:$true] %s20
      %26 = dma.hbm_to_vmem [thread:$0]  %s19, 2048, %s21, [#allocation3], 128, 128, 8
    $region5: #{tpu_custom_call.1} parent=1 // pred_fallthru
      _
    // Predicated region
    $region6: #{tpu_custom_call.1} parent=1 // pred_check
      _
    $region7: #{tpu_custom_call.1} parent=1 // pred_check_branch
      %28 = sbr.rel (0) target = $region9
    $region8: #{tpu_custom_call.1} parent=1 // pred_region
      %s29 = sadd.s32 0, 0
      %s30 = smul.u32 4, %s29
      %s32 = ssub.s32 2048, 2048
      %33 = vsyncadd [#allocation6], %s32
      %s34 = smul.addr %s30, 128
      %s35 = scalar_lea.hbm %s1, %s34
      %s36 = sshll.u32 [#allocation5], 4
      %s37 = int_to_ptr.vmem [resolvable:$true] %s36
      %42 = dma.hbm_to_vmem [thread:$0]  %s35, 2048, %s37, [#allocation6], 128, 128, 8
    $region9: #{tpu_custom_call.1} parent=1 // pred_fallthru
      _
    // Predicated region
    $region10: #{tpu_custom_call.1} parent=1 // pred_check
      _
    $region11: #{tpu_custom_call.1} parent=1 // pred_check_branch
      %44 = sbr.rel (0) target = $region13
    $region12: #{tpu_custom_call.1} parent=1 // pred_region
      %s45 = sadd.s32 0, 0
      %s47 = ssub.s32 128, 128
      %48 = vsyncadd [#allocation6], %s47
      %s49 = smul.addr %s45, 128
      %s50 = scalar_lea.hbm %s2, %s49
      %s52 = sshll.u32 [#allocation7], 4
      %s53 = int_to_ptr.vmem [resolvable:$true] %s52
      %55 = dma.hbm_to_vmem [thread:$0]  %s50, 128, %s53, [#allocation6]
    $region13: #{tpu_custom_call.1} parent=1 // pred_fallthru
      _
    // Predicated region
    $region14: #{tpu_custom_call.1} parent=1 // pred_check
      _
    $region15: #{tpu_custom_call.1} parent=1 // pred_check_branch
      %57 = sbr.rel (0) target = $region17
    $region16: #{tpu_custom_call.1} parent=1 // pred_region
      %58 = dma.done [#allocation3], 2048
    $region17: #{tpu_custom_call.1} parent=1 // pred_fallthru
      _
    // Predicated region
    $region18: #{tpu_custom_call.1} parent=1 // pred_check
      _
    $region19: #{tpu_custom_call.1} parent=1 // pred_check_branch
      %60 = sbr.rel (0) target = $region21
    $region20: #{tpu_custom_call.1} parent=1 // pred_region
      %61 = dma.done [#allocation6], 2048
    $region21: #{tpu_custom_call.1} parent=1 // pred_fallthru
      _
    // Predicated region
    $region22: #{tpu_custom_call.1} parent=1 // pred_check
      _
    $region23: #{tpu_custom_call.1} parent=1 // pred_check_branch
      %63 = sbr.rel (0) target = $region25
    $region24: #{tpu_custom_call.1} parent=1 // pred_region
      %64 = dma.done [#allocation6], 128
    $region25: #{tpu_custom_call.1} parent=1 // pred_fallthru
      _
    %s65 = sadd.s32 0, 0
    %s66 = smul.u32 4, %s65
    %s67 = sadd.s32 0, 0
    %s68 = smul.u32 4, %s67
    %s69 = sadd.s32 0, 0
    %p70 = scmp.eq.s32.totalorder 0, 0
    // Predicated region
    $region26: #{tpu_custom_call.1} parent=1 // pred_check
      %p71 = pneg %p70
    $region27: #{tpu_custom_call.1} parent=1 // pred_check_branch
      %73 = sbr.rel (%p71) target = $region29
    $region28: #{tpu_custom_call.1} parent=1 // pred_region
      %74 = vst [vmem:[#allocation8] sm:$0xff] 0.0
      %75 = vst [vmem:[#allocation8 + $0x8] sm:$0xff] 0.0
    $region29: #{tpu_custom_call.1} parent=1 // pred_fallthru
      _
    %v76 = vld [vmem:[#allocation2] sm:$0xff]
    %v77 = vld [vmem:[#allocation2 + $0x8] sm:$0xff]
    %v78 = vld [vmem:[#allocation2 + $0x10] sm:$0xff]
    %v79 = vld [vmem:[#allocation2 + $0x18] sm:$0xff]
    %s80 = scalar_lea.vmem [#allocation2], 32
    %v81 = vld [vmem:[%s80] sm:$0xff]
    %v82 = vld [vmem:[%s80 + $0x8] sm:$0xff]
    %v83 = vld [vmem:[%s80 + $0x10] sm:$0xff]
    %v84 = vld [vmem:[%s80 + $0x18] sm:$0xff]
    %s85 = scalar_lea.vmem [#allocation2], 64
    %v86 = vld [vmem:[%s85] sm:$0xff]
    %v87 = vld [vmem:[%s85 + $0x8] sm:$0xff]
    %v88 = vld [vmem:[%s85 + $0x10] sm:$0xff]
    %v89 = vld [vmem:[%s85 + $0x18] sm:$0xff]
    %s90 = scalar_lea.vmem [#allocation2], 96
    %v91 = vld [vmem:[%s90] sm:$0xff]
    %v92 = vld [vmem:[%s90 + $0x8] sm:$0xff]
    %v93 = vld [vmem:[%s90 + $0x10] sm:$0xff]
    %v94 = vld [vmem:[%s90 + $0x18] sm:$0xff]
    %v95 = vld [vmem:[#allocation5] sm:$0xff]
    %v96 = vld [vmem:[#allocation5 + $0x8] sm:$0xff]
    %v97 = vld [vmem:[#allocation5 + $0x10] sm:$0xff]
    %v98 = vld [vmem:[#allocation5 + $0x18] sm:$0xff]
    %s99 = scalar_lea.vmem [#allocation5], 32
    %v100 = vld [vmem:[%s99] sm:$0xff]
    %v101 = vld [vmem:[%s99 + $0x8] sm:$0xff]
    %v102 = vld [vmem:[%s99 + $0x10] sm:$0xff]
    %v103 = vld [vmem:[%s99 + $0x18] sm:$0xff]
    %s104 = scalar_lea.vmem [#allocation5], 64
    %v105 = vld [vmem:[%s104] sm:$0xff]
    %v106 = vld [vmem:[%s104 + $0x8] sm:$0xff]
    %v107 = vld [vmem:[%s104 + $0x10] sm:$0xff]
    %v108 = vld [vmem:[%s104 + $0x18] sm:$0xff]
    %s109 = scalar_lea.vmem [#allocation5], 96
    %v110 = vld [vmem:[%s109] sm:$0xff]
    %v111 = vld [vmem:[%s109 + $0x8] sm:$0xff]
    %v112 = vld [vmem:[%s109 + $0x10] sm:$0xff]
    %v113 = vld [vmem:[%s109 + $0x18] sm:$0xff]
    %v114 = vld [vmem:[#allocation7] sm:$0xff]
    %v115 = vunpack.c.0.s8 %v114
    %v116 = vunpack.c.1.s8 %v114
    %v117 = vunpack.c.2.s8 %v114
    %v118 = vunpack.c.3.s8 %v114
    %v119 = vcvt.s32.f32 %v115
    %v120 = vcvt.s32.f32 %v116
    %v121 = vcvt.s32.f32 %v117
    %v122 = vcvt.s32.f32 %v118
    %v123 = vmul.f32 %v86, 0.5
    %v124 = vmul.f32 %v87, 0.5
    %v125 = vmul.f32 %v88, 0.5
    %v126 = vmul.f32 %v89, 0.5
    %v127 = vmul.f32 %v91, 0.5
    %v128 = vmul.f32 %v92, 0.5
    %v129 = vmul.f32 %v93, 0.5
    %v130 = vmul.f32 %v94, 0.5
    %v131 = vmul.f32 %v105, 0.5
    %v132 = vmul.f32 %v106, 0.5
    %v133 = vmul.f32 %v107, 0.5
    %v134 = vmul.f32 %v108, 0.5
    %v135 = vmul.f32 %v110, 0.5
    %v136 = vmul.f32 %v111, 0.5
    %v137 = vmul.f32 %v112, 0.5
    %v138 = vmul.f32 %v113, 0.5
    %v139 = vsub.f32 %v76, %v123
    %v140 = vsub.f32 %v77, %v124
    %v141 = vsub.f32 %v78, %v125
    %v142 = vsub.f32 %v79, %v126
    %v143 = vsub.f32 %v95, %v131
    %v144 = vsub.f32 %v96, %v132
    %v145 = vsub.f32 %v97, %v133
    %v146 = vsub.f32 %v98, %v134
    %v147 = vmax.f32 %v139, %v143
    %v148 = vmax.f32 %v140, %v144
    %v149 = vmax.f32 %v141, %v145
    %v150 = vmax.f32 %v142, %v146
    %v151 = vsub.f32 %v81, %v127
    %v152 = vsub.f32 %v82, %v128
    %v153 = vsub.f32 %v83, %v129
    %v154 = vsub.f32 %v84, %v130
    %v155 = vsub.f32 %v100, %v135
    %v156 = vsub.f32 %v101, %v136
    %v157 = vsub.f32 %v102, %v137
    %v158 = vsub.f32 %v103, %v138
    %v159 = vmax.f32 %v151, %v155
    %v160 = vmax.f32 %v152, %v156
    %v161 = vmax.f32 %v153, %v157
    %v162 = vmax.f32 %v154, %v158
    %v163 = vadd.f32 %v76, %v123
    %v164 = vadd.f32 %v77, %v124
    %v165 = vadd.f32 %v78, %v125
    %v166 = vadd.f32 %v79, %v126
    %v167 = vadd.f32 %v95, %v131
    %v168 = vadd.f32 %v96, %v132
    %v169 = vadd.f32 %v97, %v133
    %v170 = vadd.f32 %v98, %v134
    %v171 = vmin.f32 %v163, %v167
    %v172 = vmin.f32 %v164, %v168
    %v173 = vmin.f32 %v165, %v169
    %v174 = vmin.f32 %v166, %v170
    %v175 = vadd.f32 %v81, %v127
    %v176 = vadd.f32 %v82, %v128
    %v177 = vadd.f32 %v83, %v129
    %v178 = vadd.f32 %v84, %v130
    %v179 = vadd.f32 %v100, %v135
    %v180 = vadd.f32 %v101, %v136
    %v181 = vadd.f32 %v102, %v137
    %v182 = vadd.f32 %v103, %v138
    %v183 = vmin.f32 %v175, %v179
    %v184 = vmin.f32 %v176, %v180
    %v185 = vmin.f32 %v177, %v181
    %v186 = vmin.f32 %v178, %v182
    %v187 = vmul.f32 %v86, %v91
    %v188 = vmul.f32 %v87, %v92
    %v189 = vmul.f32 %v88, %v93
    %v190 = vmul.f32 %v89, %v94
    %v191 = vmul.f32 %v105, %v110
    %v192 = vmul.f32 %v106, %v111
    %v193 = vmul.f32 %v107, %v112
    %v194 = vmul.f32 %v108, %v113
    %vm195 = vcmp.lt.f32.partialorder %v147, %v171
    %vm196 = vcmp.lt.f32.partialorder %v148, %v172
    %vm197 = vcmp.lt.f32.partialorder %v149, %v173
    %vm198 = vcmp.lt.f32.partialorder %v150, %v174
    %vm199 = vcmp.lt.f32.partialorder %v159, %v183
    %vm200 = vcmp.lt.f32.partialorder %v160, %v184
    %vm201 = vcmp.lt.f32.partialorder %v161, %v185
    %vm202 = vcmp.lt.f32.partialorder %v162, %v186
    %vm203 = vmand %vm195, %vm199
    %vm204 = vmand %vm196, %vm200
    %vm205 = vmand %vm197, %vm201
    %vm206 = vmand %vm198, %vm202
    %v207 = vsub.f32 %v171, %v147
    %v208 = vsub.f32 %v172, %v148
    %v209 = vsub.f32 %v173, %v149
    %v210 = vsub.f32 %v174, %v150
    %v211 = vsub.f32 %v183, %v159
    %v212 = vsub.f32 %v184, %v160
    %v213 = vsub.f32 %v185, %v161
    %v214 = vsub.f32 %v186, %v162
    %v215 = vmul.f32 %v207, %v211
    %v216 = vmul.f32 %v208, %v212
    %v217 = vmul.f32 %v209, %v213
    %v218 = vmul.f32 %v210, %v214
    %v219 = vsel %vm203, %v215, 0.0
    %v220 = vsel %vm204, %v216, 0.0
    %v221 = vsel %vm205, %v217, 0.0
    %v222 = vsel %vm206, %v218, 0.0
    %v223 = vadd.f32 %v187, %v191
    %v224 = vadd.f32 %v188, %v192
    %v225 = vadd.f32 %v189, %v193
    %v226 = vadd.f32 %v190, %v194
    %v227 = vsub.f32 %v223, %v219
    %v228 = vsub.f32 %v224, %v220
    %v229 = vsub.f32 %v225, %v221
    %v230 = vsub.f32 %v226, %v222
    %v231 = vadd.f32 %v227, 1e-16
    %v232 = vadd.f32 %v228, 1e-16
    %v233 = vadd.f32 %v229, 1e-16
    %v234 = vadd.f32 %v230, 1e-16
    %v235 = vrcp.pop %v231
    %v236 = vrcp.pop %v232
    %v237 = vrcp.pop %v233
    %v238 = vrcp.pop %v234
    %v239 = vmul.f32 %v231, %v235
    %v240 = vmul.f32 %v232, %v236
    %v241 = vmul.f32 %v233, %v237
    %v242 = vmul.f32 %v234, %v238
    %v243 = vsub.f32 2.0, %v239
    %v244 = vsub.f32 2.0, %v240
    %v245 = vsub.f32 2.0, %v241
    %v246 = vsub.f32 2.0, %v242
    %v247 = vmul.f32 %v235, %v243
    %v248 = vmul.f32 %v236, %v244
    %v249 = vmul.f32 %v237, %v245
    %v250 = vmul.f32 %v238, %v246
    %v251 = vmul.f32 %v219, %v247
    %v252 = vmul.f32 %v220, %v248
    %v253 = vmul.f32 %v221, %v249
    %v254 = vmul.f32 %v222, %v250
    %v255 = vmul.f32 %v251, %v251
    %v256 = vmul.f32 %v252, %v252
    %v257 = vmul.f32 %v253, %v253
    %v258 = vmul.f32 %v254, %v254
    %v259 = vsub.f32 1.0, %v255
    %v260 = vsub.f32 1.0, %v256
    %v261 = vsub.f32 1.0, %v257
    %v262 = vsub.f32 1.0, %v258
    %v263 = vmul.f32 %v259, %v119
    %v264 = vmul.f32 %v260, %v120
    %v265 = vmul.f32 %v261, %v121
    %v266 = vmul.f32 %v262, %v122
    %v267 = vld [vmem:[#allocation8] sm:$0xff]
    %v268 = vadd.f32 %v263, %v264
    %v269 = vadd.f32 %v268, %v265
    %v270 = vadd.f32 %v269, %v266
    %v271 = vadd.f32 %v267, %v270
    %272 = vst [vmem:[#allocation8] sm:$0xff] %v271
    %s273 = scalar_lea.vmem [#allocation8], 8
    %v274 = vld [vmem:[%s273] sm:$0xff]
    %v275 = vadd.f32 %v119, %v120
    %v276 = vadd.f32 %v275, %v121
    %v277 = vadd.f32 %v276, %v122
    %v278 = vadd.f32 %v274, %v277
    %279 = vst [vmem:[%s273] sm:$0xff] %v278
    // Predicated region
    $region30: #{tpu_custom_call.1} parent=1 // pred_check
      _
    $region31: #{tpu_custom_call.1} parent=1 // pred_check_branch
      %281 = sbr.rel (0) target = $region33
    $region32: #{tpu_custom_call.1} parent=1 // pred_region
      %s283 = ssub.s32 256, 256
      %284 = vsyncadd [#allocation4], %s283
      %s285 = sshll.u32 [#allocation8], 4
      %s286 = int_to_ptr.vmem [resolvable:$true] %s285
      %291 = dma.vmem_to_hbm [thread:$0]  %s286, 256, %s3, [#allocation4], 128, 128, 8
    $region33: #{tpu_custom_call.1} parent=1 // pred_fallthru
      _
    // Predicated region
    $region34: #{tpu_custom_call.1} parent=1 // pred_check
      _
    $region35: #{tpu_custom_call.1} parent=1 // pred_check_branch
      %293 = sbr.rel (0) target = $region37
    $region36: #{tpu_custom_call.1} parent=1 // pred_region
      %294 = dma.done [#allocation4], 256
    $region37: #{tpu_custom_call.1} parent=1 // pred_fallthru
      _
    %295 = vsyncpa [#allocation3], 1
    %296 = vsyncpa [#allocation6], 1
    %297 = vsyncpa [#allocation4], 1

</llo_original>
